<compile_context>
chip_gen: v6e
topology: v6e:2x2x1
jax: 0.10.0
libtpu: 0.0.40
codegen_flags: <defaults>
</compile_context>

<pallas_src>
import functools

import jax
import jax.numpy as jnp
from jax import lax
from jax.experimental import pallas as pl
from jax.experimental.pallas import tpu as pltpu

IN_F = 5      # fc1 input features
HID = 10      # fc1 output / fc2 input features
LANES = 128   # vreg lane width
MAX_TS = 2048  # sublane-tile cap: ~12 MiB double-buffered -> safe within v7x VMEM


def gasto_kernel(x_ref, w1_ref, b1_ref, w2_ref, b2_ref, o_ref):
    """x_ref: (IN_F, TS, 128) VMEM tile (batch on sublanes x lanes);
    w1/b1/w2/b2: SMEM scalars; o_ref: (TS, 128) VMEM tile."""
    x = x_ref[...]                                   # (IN_F, TS, 128) f32
    rows = [x[k] for k in range(IN_F)]               # IN_F fully-packed (TS, 128) tiles

    out = None
    for j in range(HID):                             # unrolled: 50 FMAs + 10 relu + 10 FMAs
        h = rows[0] * w1_ref[0, j]
        for k in range(1, IN_F):
            h = h + rows[k] * w1_ref[k, j]
        h = jnp.maximum(h + b1_ref[j], 0.0)          # ReLU
        if out is None:
            out = h * w2_ref[j] + b2_ref[0]          # fold fc2 bias into first term
        else:
            out = out + h * w2_ref[j]
    o_ref[...] = out                                 # dense whole-vreg stores


@functools.partial(jax.jit, static_argnames=("ts",))
def gasto_predictor(x, w1, b1, w2, b2, *, ts=512):
    """x: (B, 5) f32; w1: (5, 10); b1: (10,); w2: (10,); b2: (1,). Returns (B, 1) f32.

    ts = sublane-rows per grid step (ts*128 batch elements). Clamped to a multiple
    of 8 and to MAX_TS so double-buffered VMEM stays well inside every generation's
    budget (v7x: 64 MiB physical / 32 MiB scoped default). For large B the default
    ts keeps n_blocks >= 2 so the "parallel" axis can split across v7x's two TCs.
    """
    B = x.shape[0]
    sb = pl.cdiv(B, LANES)                 # 128-lane rows needed for the batch
    sb_min = pl.cdiv(sb, 8) * 8            # round up to the sublane granule
    ts = max(8, min(int(ts), MAX_TS, sb_min))
    ts = pl.cdiv(ts, 8) * 8                # keep block sublane dim a multiple of 8
    n_blocks = pl.cdiv(sb_min, ts)
    sb_pad = n_blocks * ts
    b_pad = sb_pad * LANES

    # Feature-major view of x, zero-padded on the batch axis, reshaped so batch
    # fills (sublane, lane) = (sb_pad, 128). Under jit this transpose+pad+reshape
    # fuses into one copy.
    # TODO(synk): producing x feature-major upstream would remove this HBM->HBM pass.
    xt = jnp.transpose(x.astype(jnp.float32))               # (5, B)
    xt = jnp.pad(xt, ((0, 0), (0, b_pad - B)))               # (5, b_pad)
    x3 = xt.reshape(IN_F, sb_pad, LANES)                      # (5, sb_pad, 128)

    smem_spec = pl.BlockSpec(memory_space=pltpu.MemorySpace.SMEM)

    out = pl.pallas_call(
        gasto_kernel,
        out_shape=jax.ShapeDtypeStruct((sb_pad, LANES), jnp.float32),
        grid=(n_blocks,),
        in_specs=[
            # x: pipelined (double-buffered) fully sublane+lane dense tiles.
            pl.BlockSpec((IN_F, ts, LANES), lambda i: (0, i, 0)),
            # weights/biases: resident SMEM scalars.
            smem_spec,  # w1 (5, 10)
            smem_spec,  # b1 (10,)
            smem_spec,  # w2 (10,)
            smem_spec,  # b2 (1,)
        ],
        out_specs=pl.BlockSpec((ts, LANES), lambda i: (i, 0)),
        compiler_params=pltpu.CompilerParams(
            # batch grid axis is independent -> megacore sharding on v7x,
            # harmless no-op on v5e/v6e.
            dimension_semantics=("parallel",),
        ),
    )(x3, w1, b1, w2, b2)

    # Drop padding, return in the original (B, 1) orientation.
    return out.reshape(b_pad)[:B].reshape(B, 1)


def init_params(key):
    # Deterministic synthetic parameters; shapes mirror the torch module
    # (fc1.weight.T, fc1.bias, fc2.weight.T squeezed, fc2.bias).
    k1, k2, k3, k4 = jax.random.split(key, 4)
    w1 = jax.random.normal(k1, (IN_F, HID), jnp.float32) * 0.3
    b1 = jax.random.normal(k2, (HID,), jnp.float32) * 0.1
    w2 = jax.random.normal(k3, (HID,), jnp.float32) * 0.3
    b2 = jax.random.normal(k4, (1,), jnp.float32) * 0.1
    return w1, b1, w2, b2


def reference(x, w1, b1, w2, b2):
    # True-f32 reference (HIGHEST precision so the TPU matmul doesn't drop to bf16).
    h = jnp.maximum(jnp.dot(x, w1, precision=lax.Precision.HIGHEST) + b1, 0.0)
    return jnp.dot(h, w2.reshape(HID, 1), precision=lax.Precision.HIGHEST) + b2


if __name__ == "__main__":
    B = 200  # small; not a multiple of 128 -> exercises the padding path
    key = jax.random.PRNGKey(0)
    kx, kp = jax.random.split(key)
    x = jax.random.normal(kx, (B, IN_F), jnp.float32)
    w1, b1, w2, b2 = init_params(kp)

    out = jax.block_until_ready(gasto_predictor(x, w1, b1, w2, b2))
    ref = reference(x, w1, b1, w2, b2)

    assert out.shape == (B, 1), out.shape
    assert jnp.allclose(out, ref, atol=1e-5, rtol=1e-5), (
        float(jnp.max(jnp.abs(out - ref))))
    print("KERNEL_OK")
</pallas_src>

<mosaic_0001>
module attributes {stable_mosaic.version = 11 : i64} {
  func.func @gasto_kernel(%arg0: i32, %arg1: memref<5x8x128xf32, #tpu.memory_space<vmem>>, %arg2: memref<5x10xf32, #tpu.memory_space<smem>>, %arg3: memref<10xf32, #tpu.memory_space<smem>>, %arg4: memref<10xf32, #tpu.memory_space<smem>>, %arg5: memref<1xf32, #tpu.memory_space<smem>>, %arg6: memref<8x128xf32, #tpu.memory_space<vmem>>) attributes {dimension_semantics = [#tpu.dimension_semantics<parallel>], iteration_bounds = array<i64: 1>, scalar_prefetch = 0 : i64, scratch_operands = 0 : i64, tpu.core_type = #tpu.core_type<tc>, window_params = [{transform_indices = @transform_0, window_bounds = array<i64: 5, 8, 128>}, {transform_indices = @transform_1, window_bounds = array<i64: 5, 10>}, {transform_indices = @transform_2, window_bounds = array<i64: 10>}, {transform_indices = @transform_3, window_bounds = array<i64: 10>}, {transform_indices = @transform_4, window_bounds = array<i64: 1>}, {transform_indices = @transform_5, window_bounds = array<i64: 8, 128>}]} {
    %c0 = arith.constant 0 : index
    %c0_0 = arith.constant 0 : index
    %c0_1 = arith.constant 0 : index
    %0 = vector.load %arg1[%c0, %c0_0, %c0_1] : memref<5x8x128xf32, #tpu.memory_space<vmem>>, vector<5x8x128xf32>
    %1 = vector.extract_strided_slice %0 {offsets = [0, 0, 0], sizes = [1, 8, 128], strides = [1, 1, 1]} : vector<5x8x128xf32> to vector<1x8x128xf32>
    %2 = vector.shape_cast %1 : vector<1x8x128xf32> to vector<8x128xf32>
    %3 = vector.extract_strided_slice %0 {offsets = [1, 0, 0], sizes = [1, 8, 128], strides = [1, 1, 1]} : vector<5x8x128xf32> to vector<1x8x128xf32>
    %4 = vector.shape_cast %3 : vector<1x8x128xf32> to vector<8x128xf32>
    %5 = vector.extract_strided_slice %0 {offsets = [2, 0, 0], sizes = [1, 8, 128], strides = [1, 1, 1]} : vector<5x8x128xf32> to vector<1x8x128xf32>
    %6 = vector.shape_cast %5 : vector<1x8x128xf32> to vector<8x128xf32>
    %7 = vector.extract_strided_slice %0 {offsets = [3, 0, 0], sizes = [1, 8, 128], strides = [1, 1, 1]} : vector<5x8x128xf32> to vector<1x8x128xf32>
    %8 = vector.shape_cast %7 : vector<1x8x128xf32> to vector<8x128xf32>
    %9 = vector.extract_strided_slice %0 {offsets = [4, 0, 0], sizes = [1, 8, 128], strides = [1, 1, 1]} : vector<5x8x128xf32> to vector<1x8x128xf32>
    %10 = vector.shape_cast %9 : vector<1x8x128xf32> to vector<8x128xf32>
    %c0_2 = arith.constant 0 : index
    %c0_3 = arith.constant 0 : index
    %11 = memref.load %arg2[%c0_2, %c0_3] : memref<5x10xf32, #tpu.memory_space<smem>>
    %12 = vector.broadcast %11 : f32 to vector<8x128xf32>
    %13 = arith.mulf %2, %12 : vector<8x128xf32>
    %c1 = arith.constant 1 : index
    %c0_4 = arith.constant 0 : index
    %14 = memref.load %arg2[%c1, %c0_4] : memref<5x10xf32, #tpu.memory_space<smem>>
    %15 = vector.broadcast %14 : f32 to vector<8x128xf32>
    %16 = arith.mulf %4, %15 : vector<8x128xf32>
    %17 = arith.addf %13, %16 : vector<8x128xf32>
    %c2 = arith.constant 2 : index
    %c0_5 = arith.constant 0 : index
    %18 = memref.load %arg2[%c2, %c0_5] : memref<5x10xf32, #tpu.memory_space<smem>>
    %19 = vector.broadcast %18 : f32 to vector<8x128xf32>
    %20 = arith.mulf %6, %19 : vector<8x128xf32>
    %21 = arith.addf %17, %20 : vector<8x128xf32>
    %c3 = arith.constant 3 : index
    %c0_6 = arith.constant 0 : index
    %22 = memref.load %arg2[%c3, %c0_6] : memref<5x10xf32, #tpu.memory_space<smem>>
    %23 = vector.broadcast %22 : f32 to vector<8x128xf32>
    %24 = arith.mulf %8, %23 : vector<8x128xf32>
    %25 = arith.addf %21, %24 : vector<8x128xf32>
    %c4 = arith.constant 4 : index
    %c0_7 = arith.constant 0 : index
    %26 = memref.load %arg2[%c4, %c0_7] : memref<5x10xf32, #tpu.memory_space<smem>>
    %27 = vector.broadcast %26 : f32 to vector<8x128xf32>
    %28 = arith.mulf %10, %27 : vector<8x128xf32>
    %29 = arith.addf %25, %28 : vector<8x128xf32>
    %c0_8 = arith.constant 0 : index
    %30 = memref.load %arg3[%c0_8] : memref<10xf32, #tpu.memory_space<smem>>
    %31 = vector.broadcast %30 : f32 to vector<8x128xf32>
    %32 = arith.addf %29, %31 : vector<8x128xf32>
    %cst = arith.constant 0.000000e+00 : f32
    %33 = vector.broadcast %cst : f32 to vector<8x128xf32>
    %34 = arith.maximumf %32, %33 : vector<8x128xf32>
    %c0_9 = arith.constant 0 : index
    %35 = memref.load %arg4[%c0_9] : memref<10xf32, #tpu.memory_space<smem>>
    %36 = vector.broadcast %35 : f32 to vector<8x128xf32>
    %37 = arith.mulf %34, %36 : vector<8x128xf32>
    %c0_10 = arith.constant 0 : index
    %38 = memref.load %arg5[%c0_10] : memref<1xf32, #tpu.memory_space<smem>>
    %39 = vector.broadcast %38 : f32 to vector<8x128xf32>
    %40 = arith.addf %37, %39 : vector<8x128xf32>
    %c0_11 = arith.constant 0 : index
    %c1_12 = arith.constant 1 : index
    %41 = memref.load %arg2[%c0_11, %c1_12] : memref<5x10xf32, #tpu.memory_space<smem>>
    %42 = vector.broadcast %41 : f32 to vector<8x128xf32>
    %43 = arith.mulf %2, %42 : vector<8x128xf32>
    %c1_13 = arith.constant 1 : index
    %c1_14 = arith.constant 1 : index
    %44 = memref.load %arg2[%c1_13, %c1_14] : memref<5x10xf32, #tpu.memory_space<smem>>
    %45 = vector.broadcast %44 : f32 to vector<8x128xf32>
    %46 = arith.mulf %4, %45 : vector<8x128xf32>
    %47 = arith.addf %43, %46 : vector<8x128xf32>
    %c2_15 = arith.constant 2 : index
    %c1_16 = arith.constant 1 : index
    %48 = memref.load %arg2[%c2_15, %c1_16] : memref<5x10xf32, #tpu.memory_space<smem>>
    %49 = vector.broadcast %48 : f32 to vector<8x128xf32>
    %50 = arith.mulf %6, %49 : vector<8x128xf32>
    %51 = arith.addf %47, %50 : vector<8x128xf32>
    %c3_17 = arith.constant 3 : index
    %c1_18 = arith.constant 1 : index
    %52 = memref.load %arg2[%c3_17, %c1_18] : memref<5x10xf32, #tpu.memory_space<smem>>
    %53 = vector.broadcast %52 : f32 to vector<8x128xf32>
    %54 = arith.mulf %8, %53 : vector<8x128xf32>
    %55 = arith.addf %51, %54 : vector<8x128xf32>
    %c4_19 = arith.constant 4 : index
    %c1_20 = arith.constant 1 : index
    %56 = memref.load %arg2[%c4_19, %c1_20] : memref<5x10xf32, #tpu.memory_space<smem>>
    %57 = vector.broadcast %56 : f32 to vector<8x128xf32>
    %58 = arith.mulf %10, %57 : vector<8x128xf32>
    %59 = arith.addf %55, %58 : vector<8x128xf32>
    %c1_21 = arith.constant 1 : index
    %60 = memref.load %arg3[%c1_21] : memref<10xf32, #tpu.memory_space<smem>>
    %61 = vector.broadcast %60 : f32 to vector<8x128xf32>
    %62 = arith.addf %59, %61 : vector<8x128xf32>
    %cst_22 = arith.constant 0.000000e+00 : f32
    %63 = vector.broadcast %cst_22 : f32 to vector<8x128xf32>
    %64 = arith.maximumf %62, %63 : vector<8x128xf32>
    %c1_23 = arith.constant 1 : index
    %65 = memref.load %arg4[%c1_23] : memref<10xf32, #tpu.memory_space<smem>>
    %66 = vector.broadcast %65 : f32 to vector<8x128xf32>
    %67 = arith.mulf %64, %66 : vector<8x128xf32>
    %68 = arith.addf %40, %67 : vector<8x128xf32>
    %c0_24 = arith.constant 0 : index
    %c2_25 = arith.constant 2 : index
    %69 = memref.load %arg2[%c0_24, %c2_25] : memref<5x10xf32, #tpu.memory_space<smem>>
    %70 = vector.broadcast %69 : f32 to vector<8x128xf32>
    %71 = arith.mulf %2, %70 : vector<8x128xf32>
    %c1_26 = arith.constant 1 : index
    %c2_27 = arith.constant 2 : index
    %72 = memref.load %arg2[%c1_26, %c2_27] : memref<5x10xf32, #tpu.memory_space<smem>>
    %73 = vector.broadcast %72 : f32 to vector<8x128xf32>
    %74 = arith.mulf %4, %73 : vector<8x128xf32>
    %75 = arith.addf %71, %74 : vector<8x128xf32>
    %c2_28 = arith.constant 2 : index
    %c2_29 = arith.constant 2 : index
    %76 = memref.load %arg2[%c2_28, %c2_29] : memref<5x10xf32, #tpu.memory_space<smem>>
    %77 = vector.broadcast %76 : f32 to vector<8x128xf32>
    %78 = arith.mulf %6, %77 : vector<8x128xf32>
    %79 = arith.addf %75, %78 : vector<8x128xf32>
    %c3_30 = arith.constant 3 : index
    %c2_31 = arith.constant 2 : index
    %80 = memref.load %arg2[%c3_30, %c2_31] : memref<5x10xf32, #tpu.memory_space<smem>>
    %81 = vector.broadcast %80 : f32 to vector<8x128xf32>
    %82 = arith.mulf %8, %81 : vector<8x128xf32>
    %83 = arith.addf %79, %82 : vector<8x128xf32>
    %c4_32 = arith.constant 4 : index
    %c2_33 = arith.constant 2 : index
    %84 = memref.load %arg2[%c4_32, %c2_33] : memref<5x10xf32, #tpu.memory_space<smem>>
    %85 = vector.broadcast %84 : f32 to vector<8x128xf32>
    %86 = arith.mulf %10, %85 : vector<8x128xf32>
    %87 = arith.addf %83, %86 : vector<8x128xf32>
    %c2_34 = arith.constant 2 : index
    %88 = memref.load %arg3[%c2_34] : memref<10xf32, #tpu.memory_space<smem>>
    %89 = vector.broadcast %88 : f32 to vector<8x128xf32>
    %90 = arith.addf %87, %89 : vector<8x128xf32>
    %cst_35 = arith.constant 0.000000e+00 : f32
    %91 = vector.broadcast %cst_35 : f32 to vector<8x128xf32>
    %92 = arith.maximumf %90, %91 : vector<8x128xf32>
    %c2_36 = arith.constant 2 : index
    %93 = memref.load %arg4[%c2_36] : memref<10xf32, #tpu.memory_space<smem>>
    %94 = vector.broadcast %93 : f32 to vector<8x128xf32>
    %95 = arith.mulf %92, %94 : vector<8x128xf32>
    %96 = arith.addf %68, %95 : vector<8x128xf32>
    %c0_37 = arith.constant 0 : index
    %c3_38 = arith.constant 3 : index
    %97 = memref.load %arg2[%c0_37, %c3_38] : memref<5x10xf32, #tpu.memory_space<smem>>
    %98 = vector.broadcast %97 : f32 to vector<8x128xf32>
    %99 = arith.mulf %2, %98 : vector<8x128xf32>
    %c1_39 = arith.constant 1 : index
    %c3_40 = arith.constant 3 : index
    %100 = memref.load %arg2[%c1_39, %c3_40] : memref<5x10xf32, #tpu.memory_space<smem>>
    %101 = vector.broadcast %100 : f32 to vector<8x128xf32>
    %102 = arith.mulf %4, %101 : vector<8x128xf32>
    %103 = arith.addf %99, %102 : vector<8x128xf32>
    %c2_41 = arith.constant 2 : index
    %c3_42 = arith.constant 3 : index
    %104 = memref.load %arg2[%c2_41, %c3_42] : memref<5x10xf32, #tpu.memory_space<smem>>
    %105 = vector.broadcast %104 : f32 to vector<8x128xf32>
    %106 = arith.mulf %6, %105 : vector<8x128xf32>
    %107 = arith.addf %103, %106 : vector<8x128xf32>
    %c3_43 = arith.constant 3 : index
    %c3_44 = arith.constant 3 : index
    %108 = memref.load %arg2[%c3_43, %c3_44] : memref<5x10xf32, #tpu.memory_space<smem>>
    %109 = vector.broadcast %108 : f32 to vector<8x128xf32>
    %110 = arith.mulf %8, %109 : vector<8x128xf32>
    %111 = arith.addf %107, %110 : vector<8x128xf32>
    %c4_45 = arith.constant 4 : index
    %c3_46 = arith.constant 3 : index
    %112 = memref.load %arg2[%c4_45, %c3_46] : memref<5x10xf32, #tpu.memory_space<smem>>
    %113 = vector.broadcast %112 : f32 to vector<8x128xf32>
    %114 = arith.mulf %10, %113 : vector<8x128xf32>
    %115 = arith.addf %111, %114 : vector<8x128xf32>
    %c3_47 = arith.constant 3 : index
    %116 = memref.load %arg3[%c3_47] : memref<10xf32, #tpu.memory_space<smem>>
    %117 = vector.broadcast %116 : f32 to vector<8x128xf32>
    %118 = arith.addf %115, %117 : vector<8x128xf32>
    %cst_48 = arith.constant 0.000000e+00 : f32
    %119 = vector.broadcast %cst_48 : f32 to vector<8x128xf32>
    %120 = arith.maximumf %118, %119 : vector<8x128xf32>
    %c3_49 = arith.constant 3 : index
    %121 = memref.load %arg4[%c3_49] : memref<10xf32, #tpu.memory_space<smem>>
    %122 = vector.broadcast %121 : f32 to vector<8x128xf32>
    %123 = arith.mulf %120, %122 : vector<8x128xf32>
    %124 = arith.addf %96, %123 : vector<8x128xf32>
    %c0_50 = arith.constant 0 : index
    %c4_51 = arith.constant 4 : index
    %125 = memref.load %arg2[%c0_50, %c4_51] : memref<5x10xf32, #tpu.memory_space<smem>>
    %126 = vector.broadcast %125 : f32 to vector<8x128xf32>
    %127 = arith.mulf %2, %126 : vector<8x128xf32>
    %c1_52 = arith.constant 1 : index
    %c4_53 = arith.constant 4 : index
    %128 = memref.load %arg2[%c1_52, %c4_53] : memref<5x10xf32, #tpu.memory_space<smem>>
    %129 = vector.broadcast %128 : f32 to vector<8x128xf32>
    %130 = arith.mulf %4, %129 : vector<8x128xf32>
    %131 = arith.addf %127, %130 : vector<8x128xf32>
    %c2_54 = arith.constant 2 : index
    %c4_55 = arith.constant 4 : index
    %132 = memref.load %arg2[%c2_54, %c4_55] : memref<5x10xf32, #tpu.memory_space<smem>>
    %133 = vector.broadcast %132 : f32 to vector<8x128xf32>
    %134 = arith.mulf %6, %133 : vector<8x128xf32>
    %135 = arith.addf %131, %134 : vector<8x128xf32>
    %c3_56 = arith.constant 3 : index
    %c4_57 = arith.constant 4 : index
    %136 = memref.load %arg2[%c3_56, %c4_57] : memref<5x10xf32, #tpu.memory_space<smem>>
    %137 = vector.broadcast %136 : f32 to vector<8x128xf32>
    %138 = arith.mulf %8, %137 : vector<8x128xf32>
    %139 = arith.addf %135, %138 : vector<8x128xf32>
    %c4_58 = arith.constant 4 : index
    %c4_59 = arith.constant 4 : index
    %140 = memref.load %arg2[%c4_58, %c4_59] : memref<5x10xf32, #tpu.memory_space<smem>>
    %141 = vector.broadcast %140 : f32 to vector<8x128xf32>
    %142 = arith.mulf %10, %141 : vector<8x128xf32>
    %143 = arith.addf %139, %142 : vector<8x128xf32>
    %c4_60 = arith.constant 4 : index
    %144 = memref.load %arg3[%c4_60] : memref<10xf32, #tpu.memory_space<smem>>
    %145 = vector.broadcast %144 : f32 to vector<8x128xf32>
    %146 = arith.addf %143, %145 : vector<8x128xf32>
    %cst_61 = arith.constant 0.000000e+00 : f32
    %147 = vector.broadcast %cst_61 : f32 to vector<8x128xf32>
    %148 = arith.maximumf %146, %147 : vector<8x128xf32>
    %c4_62 = arith.constant 4 : index
    %149 = memref.load %arg4[%c4_62] : memref<10xf32, #tpu.memory_space<smem>>
    %150 = vector.broadcast %149 : f32 to vector<8x128xf32>
    %151 = arith.mulf %148, %150 : vector<8x128xf32>
    %152 = arith.addf %124, %151 : vector<8x128xf32>
    %c0_63 = arith.constant 0 : index
    %c5 = arith.constant 5 : index
    %153 = memref.load %arg2[%c0_63, %c5] : memref<5x10xf32, #tpu.memory_space<smem>>
    %154 = vector.broadcast %153 : f32 to vector<8x128xf32>
    %155 = arith.mulf %2, %154 : vector<8x128xf32>
    %c1_64 = arith.constant 1 : index
    %c5_65 = arith.constant 5 : index
    %156 = memref.load %arg2[%c1_64, %c5_65] : memref<5x10xf32, #tpu.memory_space<smem>>
    %157 = vector.broadcast %156 : f32 to vector<8x128xf32>
    %158 = arith.mulf %4, %157 : vector<8x128xf32>
    %159 = arith.addf %155, %158 : vector<8x128xf32>
    %c2_66 = arith.constant 2 : index
    %c5_67 = arith.constant 5 : index
    %160 = memref.load %arg2[%c2_66, %c5_67] : memref<5x10xf32, #tpu.memory_space<smem>>
    %161 = vector.broadcast %160 : f32 to vector<8x128xf32>
    %162 = arith.mulf %6, %161 : vector<8x128xf32>
    %163 = arith.addf %159, %162 : vector<8x128xf32>
    %c3_68 = arith.constant 3 : index
    %c5_69 = arith.constant 5 : index
    %164 = memref.load %arg2[%c3_68, %c5_69] : memref<5x10xf32, #tpu.memory_space<smem>>
    %165 = vector.broadcast %164 : f32 to vector<8x128xf32>
    %166 = arith.mulf %8, %165 : vector<8x128xf32>
    %167 = arith.addf %163, %166 : vector<8x128xf32>
    %c4_70 = arith.constant 4 : index
    %c5_71 = arith.constant 5 : index
    %168 = memref.load %arg2[%c4_70, %c5_71] : memref<5x10xf32, #tpu.memory_space<smem>>
    %169 = vector.broadcast %168 : f32 to vector<8x128xf32>
    %170 = arith.mulf %10, %169 : vector<8x128xf32>
    %171 = arith.addf %167, %170 : vector<8x128xf32>
    %c5_72 = arith.constant 5 : index
    %172 = memref.load %arg3[%c5_72] : memref<10xf32, #tpu.memory_space<smem>>
    %173 = vector.broadcast %172 : f32 to vector<8x128xf32>
    %174 = arith.addf %171, %173 : vector<8x128xf32>
    %cst_73 = arith.constant 0.000000e+00 : f32
    %175 = vector.broadcast %cst_73 : f32 to vector<8x128xf32>
    %176 = arith.maximumf %174, %175 : vector<8x128xf32>
    %c5_74 = arith.constant 5 : index
    %177 = memref.load %arg4[%c5_74] : memref<10xf32, #tpu.memory_space<smem>>
    %178 = vector.broadcast %177 : f32 to vector<8x128xf32>
    %179 = arith.mulf %176, %178 : vector<8x128xf32>
    %180 = arith.addf %152, %179 : vector<8x128xf32>
    %c0_75 = arith.constant 0 : index
    %c6 = arith.constant 6 : index
    %181 = memref.load %arg2[%c0_75, %c6] : memref<5x10xf32, #tpu.memory_space<smem>>
    %182 = vector.broadcast %181 : f32 to vector<8x128xf32>
    %183 = arith.mulf %2, %182 : vector<8x128xf32>
    %c1_76 = arith.constant 1 : index
    %c6_77 = arith.constant 6 : index
    %184 = memref.load %arg2[%c1_76, %c6_77] : memref<5x10xf32, #tpu.memory_space<smem>>
    %185 = vector.broadcast %184 : f32 to vector<8x128xf32>
    %186 = arith.mulf %4, %185 : vector<8x128xf32>
    %187 = arith.addf %183, %186 : vector<8x128xf32>
    %c2_78 = arith.constant 2 : index
    %c6_79 = arith.constant 6 : index
    %188 = memref.load %arg2[%c2_78, %c6_79] : memref<5x10xf32, #tpu.memory_space<smem>>
    %189 = vector.broadcast %188 : f32 to vector<8x128xf32>
    %190 = arith.mulf %6, %189 : vector<8x128xf32>
    %191 = arith.addf %187, %190 : vector<8x128xf32>
    %c3_80 = arith.constant 3 : index
    %c6_81 = arith.constant 6 : index
    %192 = memref.load %arg2[%c3_80, %c6_81] : memref<5x10xf32, #tpu.memory_space<smem>>
    %193 = vector.broadcast %192 : f32 to vector<8x128xf32>
    %194 = arith.mulf %8, %193 : vector<8x128xf32>
    %195 = arith.addf %191, %194 : vector<8x128xf32>
    %c4_82 = arith.constant 4 : index
    %c6_83 = arith.constant 6 : index
    %196 = memref.load %arg2[%c4_82, %c6_83] : memref<5x10xf32, #tpu.memory_space<smem>>
    %197 = vector.broadcast %196 : f32 to vector<8x128xf32>
    %198 = arith.mulf %10, %197 : vector<8x128xf32>
    %199 = arith.addf %195, %198 : vector<8x128xf32>
    %c6_84 = arith.constant 6 : index
    %200 = memref.load %arg3[%c6_84] : memref<10xf32, #tpu.memory_space<smem>>
    %201 = vector.broadcast %200 : f32 to vector<8x128xf32>
    %202 = arith.addf %199, %201 : vector<8x128xf32>
    %cst_85 = arith.constant 0.000000e+00 : f32
    %203 = vector.broadcast %cst_85 : f32 to vector<8x128xf32>
    %204 = arith.maximumf %202, %203 : vector<8x128xf32>
    %c6_86 = arith.constant 6 : index
    %205 = memref.load %arg4[%c6_86] : memref<10xf32, #tpu.memory_space<smem>>
    %206 = vector.broadcast %205 : f32 to vector<8x128xf32>
    %207 = arith.mulf %204, %206 : vector<8x128xf32>
    %208 = arith.addf %180, %207 : vector<8x128xf32>
    %c0_87 = arith.constant 0 : index
    %c7 = arith.constant 7 : index
    %209 = memref.load %arg2[%c0_87, %c7] : memref<5x10xf32, #tpu.memory_space<smem>>
    %210 = vector.broadcast %209 : f32 to vector<8x128xf32>
    %211 = arith.mulf %2, %210 : vector<8x128xf32>
    %c1_88 = arith.constant 1 : index
    %c7_89 = arith.constant 7 : index
    %212 = memref.load %arg2[%c1_88, %c7_89] : memref<5x10xf32, #tpu.memory_space<smem>>
    %213 = vector.broadcast %212 : f32 to vector<8x128xf32>
    %214 = arith.mulf %4, %213 : vector<8x128xf32>
    %215 = arith.addf %211, %214 : vector<8x128xf32>
    %c2_90 = arith.constant 2 : index
    %c7_91 = arith.constant 7 : index
    %216 = memref.load %arg2[%c2_90, %c7_91] : memref<5x10xf32, #tpu.memory_space<smem>>
    %217 = vector.broadcast %216 : f32 to vector<8x128xf32>
    %218 = arith.mulf %6, %217 : vector<8x128xf32>
    %219 = arith.addf %215, %218 : vector<8x128xf32>
    %c3_92 = arith.constant 3 : index
    %c7_93 = arith.constant 7 : index
    %220 = memref.load %arg2[%c3_92, %c7_93] : memref<5x10xf32, #tpu.memory_space<smem>>
    %221 = vector.broadcast %220 : f32 to vector<8x128xf32>
    %222 = arith.mulf %8, %221 : vector<8x128xf32>
    %223 = arith.addf %219, %222 : vector<8x128xf32>
    %c4_94 = arith.constant 4 : index
    %c7_95 = arith.constant 7 : index
    %224 = memref.load %arg2[%c4_94, %c7_95] : memref<5x10xf32, #tpu.memory_space<smem>>
    %225 = vector.broadcast %224 : f32 to vector<8x128xf32>
    %226 = arith.mulf %10, %225 : vector<8x128xf32>
    %227 = arith.addf %223, %226 : vector<8x128xf32>
    %c7_96 = arith.constant 7 : index
    %228 = memref.load %arg3[%c7_96] : memref<10xf32, #tpu.memory_space<smem>>
    %229 = vector.broadcast %228 : f32 to vector<8x128xf32>
    %230 = arith.addf %227, %229 : vector<8x128xf32>
    %cst_97 = arith.constant 0.000000e+00 : f32
    %231 = vector.broadcast %cst_97 : f32 to vector<8x128xf32>
    %232 = arith.maximumf %230, %231 : vector<8x128xf32>
    %c7_98 = arith.constant 7 : index
    %233 = memref.load %arg4[%c7_98] : memref<10xf32, #tpu.memory_space<smem>>
    %234 = vector.broadcast %233 : f32 to vector<8x128xf32>
    %235 = arith.mulf %232, %234 : vector<8x128xf32>
    %236 = arith.addf %208, %235 : vector<8x128xf32>
    %c0_99 = arith.constant 0 : index
    %c8 = arith.constant 8 : index
    %237 = memref.load %arg2[%c0_99, %c8] : memref<5x10xf32, #tpu.memory_space<smem>>
    %238 = vector.broadcast %237 : f32 to vector<8x128xf32>
    %239 = arith.mulf %2, %238 : vector<8x128xf32>
    %c1_100 = arith.constant 1 : index
    %c8_101 = arith.constant 8 : index
    %240 = memref.load %arg2[%c1_100, %c8_101] : memref<5x10xf32, #tpu.memory_space<smem>>
    %241 = vector.broadcast %240 : f32 to vector<8x128xf32>
    %242 = arith.mulf %4, %241 : vector<8x128xf32>
    %243 = arith.addf %239, %242 : vector<8x128xf32>
    %c2_102 = arith.constant 2 : index
    %c8_103 = arith.constant 8 : index
    %244 = memref.load %arg2[%c2_102, %c8_103] : memref<5x10xf32, #tpu.memory_space<smem>>
    %245 = vector.broadcast %244 : f32 to vector<8x128xf32>
    %246 = arith.mulf %6, %245 : vector<8x128xf32>
    %247 = arith.addf %243, %246 : vector<8x128xf32>
    %c3_104 = arith.constant 3 : index
    %c8_105 = arith.constant 8 : index
    %248 = memref.load %arg2[%c3_104, %c8_105] : memref<5x10xf32, #tpu.memory_space<smem>>
    %249 = vector.broadcast %248 : f32 to vector<8x128xf32>
    %250 = arith.mulf %8, %249 : vector<8x128xf32>
    %251 = arith.addf %247, %250 : vector<8x128xf32>
    %c4_106 = arith.constant 4 : index
    %c8_107 = arith.constant 8 : index
    %252 = memref.load %arg2[%c4_106, %c8_107] : memref<5x10xf32, #tpu.memory_space<smem>>
    %253 = vector.broadcast %252 : f32 to vector<8x128xf32>
    %254 = arith.mulf %10, %253 : vector<8x128xf32>
    %255 = arith.addf %251, %254 : vector<8x128xf32>
    %c8_108 = arith.constant 8 : index
    %256 = memref.load %arg3[%c8_108] : memref<10xf32, #tpu.memory_space<smem>>
    %257 = vector.broadcast %256 : f32 to vector<8x128xf32>
    %258 = arith.addf %255, %257 : vector<8x128xf32>
    %cst_109 = arith.constant 0.000000e+00 : f32
    %259 = vector.broadcast %cst_109 : f32 to vector<8x128xf32>
    %260 = arith.maximumf %258, %259 : vector<8x128xf32>
    %c8_110 = arith.constant 8 : index
    %261 = memref.load %arg4[%c8_110] : memref<10xf32, #tpu.memory_space<smem>>
    %262 = vector.broadcast %261 : f32 to vector<8x128xf32>
    %263 = arith.mulf %260, %262 : vector<8x128xf32>
    %264 = arith.addf %236, %263 : vector<8x128xf32>
    %c0_111 = arith.constant 0 : index
    %c9 = arith.constant 9 : index
    %265 = memref.load %arg2[%c0_111, %c9] : memref<5x10xf32, #tpu.memory_space<smem>>
    %266 = vector.broadcast %265 : f32 to vector<8x128xf32>
    %267 = arith.mulf %2, %266 : vector<8x128xf32>
    %c1_112 = arith.constant 1 : index
    %c9_113 = arith.constant 9 : index
    %268 = memref.load %arg2[%c1_112, %c9_113] : memref<5x10xf32, #tpu.memory_space<smem>>
    %269 = vector.broadcast %268 : f32 to vector<8x128xf32>
    %270 = arith.mulf %4, %269 : vector<8x128xf32>
    %271 = arith.addf %267, %270 : vector<8x128xf32>
    %c2_114 = arith.constant 2 : index
    %c9_115 = arith.constant 9 : index
    %272 = memref.load %arg2[%c2_114, %c9_115] : memref<5x10xf32, #tpu.memory_space<smem>>
    %273 = vector.broadcast %272 : f32 to vector<8x128xf32>
    %274 = arith.mulf %6, %273 : vector<8x128xf32>
    %275 = arith.addf %271, %274 : vector<8x128xf32>
    %c3_116 = arith.constant 3 : index
    %c9_117 = arith.constant 9 : index
    %276 = memref.load %arg2[%c3_116, %c9_117] : memref<5x10xf32, #tpu.memory_space<smem>>
    %277 = vector.broadcast %276 : f32 to vector<8x128xf32>
    %278 = arith.mulf %8, %277 : vector<8x128xf32>
    %279 = arith.addf %275, %278 : vector<8x128xf32>
    %c4_118 = arith.constant 4 : index
    %c9_119 = arith.constant 9 : index
    %280 = memref.load %arg2[%c4_118, %c9_119] : memref<5x10xf32, #tpu.memory_space<smem>>
    %281 = vector.broadcast %280 : f32 to vector<8x128xf32>
    %282 = arith.mulf %10, %281 : vector<8x128xf32>
    %283 = arith.addf %279, %282 : vector<8x128xf32>
    %c9_120 = arith.constant 9 : index
    %284 = memref.load %arg3[%c9_120] : memref<10xf32, #tpu.memory_space<smem>>
    %285 = vector.broadcast %284 : f32 to vector<8x128xf32>
    %286 = arith.addf %283, %285 : vector<8x128xf32>
    %cst_121 = arith.constant 0.000000e+00 : f32
    %287 = vector.broadcast %cst_121 : f32 to vector<8x128xf32>
    %288 = arith.maximumf %286, %287 : vector<8x128xf32>
    %c9_122 = arith.constant 9 : index
    %289 = memref.load %arg4[%c9_122] : memref<10xf32, #tpu.memory_space<smem>>
    %290 = vector.broadcast %289 : f32 to vector<8x128xf32>
    %291 = arith.mulf %288, %290 : vector<8x128xf32>
    %292 = arith.addf %264, %291 : vector<8x128xf32>
    %c0_123 = arith.constant 0 : index
    %c0_124 = arith.constant 0 : index
    %293 = vector.load %arg6[%c0_123, %c0_124] : memref<8x128xf32, #tpu.memory_space<vmem>>, vector<8x128xf32>
    tpu.vector_store %arg6[%c0_123, %c0_124], %292 {strides = array<i32>} : memref<8x128xf32, #tpu.memory_space<vmem>>, vector<8x128xf32>,
    return
  }
  func.func @transform_0(%arg0: i32) -> (i32, i32, i32) {
    %c0_i32 = arith.constant 0 : i32
    %c0_i32_0 = arith.constant 0 : i32
    %c0_i32_1 = arith.constant 0 : i32
    return %c0_i32, %arg0, %c0_i32_0 : i32, i32, i32
  }
  func.func @transform_1(%arg0: i32) -> (i32, i32) {
    %c0_i32 = arith.constant 0 : i32
    %c0_i32_0 = arith.constant 0 : i32
    %c0_i32_1 = arith.constant 0 : i32
    return %c0_i32, %c0_i32_0 : i32, i32
  }
  func.func @transform_2(%arg0: i32) -> i32 {
    %c0_i32 = arith.constant 0 : i32
    %c0_i32_0 = arith.constant 0 : i32
    return %c0_i32 : i32
  }
  func.func @transform_3(%arg0: i32) -> i32 {
    %c0_i32 = arith.constant 0 : i32
    %c0_i32_0 = arith.constant 0 : i32
    return %c0_i32 : i32
  }
  func.func @transform_4(%arg0: i32) -> i32 {
    %c0_i32 = arith.constant 0 : i32
    %c0_i32_0 = arith.constant 0 : i32
    return %c0_i32 : i32
  }
  func.func @transform_5(%arg0: i32) -> (i32, i32) {
    %c0_i32 = arith.constant 0 : i32
    %c0_i32_0 = arith.constant 0 : i32
    return %arg0, %c0_i32 : i32, i32
  }
}

</mosaic_0001>

<llo_original>
// kernel: gasto_predictor.1
$region0: #{gasto_predictor.1}
  #allocation0 [shape = 'u32[]', space=smem, size = 0x4, offset = 0x4, fixed_abs, tag = 'smem constant byte address 0x4 - core index']
  #allocation1 [shape = 'u32[144,128]{1,0:T(1,128)}', space=vmem, size = 0x12000, scoped, tag = 'internal scratch']
  #allocation2 [shape = 'f32[1]{0:T(128)S(6)}', space=smem, size = 0x200, scoped, tag = 'scoped memory for gasto_predictor.1']
  %s0 = inlined_call_operand.vmem [shape: f32[5,8,128], index: 0, kind: input, shape index: {}]
  %s1 = inlined_call_operand.vmem [shape: f32[5,10], index: 1, kind: input, shape index: {}]
  %s2 = inlined_call_operand.vmem [shape: f32[10], index: 2, kind: input, shape index: {}]
  %s3 = inlined_call_operand.vmem [shape: f32[10], index: 3, kind: input, shape index: {}]
  %s4 = inlined_call_operand.<no memory space> [shape: f32[1], index: 4, kind: input, shape index: {}]
  %s5 = inlined_call_operand.vmem [shape: f32[8,128], index: 5, kind: output, shape index: {}]
  %s6 = sld [smem:[#allocation0]]
  $region42: #{gasto_predictor.1} parent=0
    _
  %s8 = ssub.s32 1, %s6
  %s9 = scalar_select 0, %s8, %s6
  %10 = sst [smem:[#allocation2]] %s4
  $region1: #{gasto_predictor.1} parent=0
    #allocation3 [shape = 'u8[4096]{0}', space=smem, size = 0x1000, scoped, tag = 'input window, operand 1, single buffered']
    #allocation4 [shape = 's32[1]{0}', space=sflag, size = 0x4, scoped, tag = 'scoped memory for gasto_predictor.1']
    #allocation5 [shape = 'u8[512]{0}', space=smem, size = 0x200, scoped, tag = 'input window, operand 2, single buffered']
    #allocation6 [shape = 's32[1]{0}', space=sflag, size = 0x4, scoped, tag = 'scoped memory for gasto_predictor.1']
    #allocation7 [shape = 'u8[512]{0}', space=smem, size = 0x200, scoped, tag = 'input window, operand 3, single buffered']
    %11 = vsyncpa [#allocation4], 0
    %12 = vsyncpa [#allocation6], 0
    // Predicated region
    $region2: #{gasto_predictor.1} parent=1 // pred_check
      _
    $region3: #{gasto_predictor.1} parent=1 // pred_check_branch
      %14 = sbr.rel (0) target = $region5
    $region4: #{gasto_predictor.1} parent=1 // pred_region
      _
    $region5: #{gasto_predictor.1} parent=1 // pred_fallthru
      _
    // Predicated region
    $region6: #{gasto_predictor.1} parent=1 // pred_check
      _
    $region7: #{gasto_predictor.1} parent=1 // pred_check_branch
      %16 = sbr.rel (0) target = $region9
    $region8: #{gasto_predictor.1} parent=1 // pred_region
      %s18 = ssub.s32 128, 128
      %19 = vsyncadd [#allocation4], %s18
      %s21 = sshll.u32 %s1, 4
      %s22 = int_to_ptr.vmem [resolvable:$true] %s21
      %24 = dma.vmem_to_smem %s22, 128, [#allocation3], [#allocation4]
    $region9: #{gasto_predictor.1} parent=1 // pred_fallthru
      _
    // Predicated region
    $region10: #{gasto_predictor.1} parent=1 // pred_check
      _
    $region11: #{gasto_predictor.1} parent=1 // pred_check_branch
      %26 = sbr.rel (0) target = $region13
    $region12: #{gasto_predictor.1} parent=1 // pred_region
      %s28 = ssub.s32 16, 16
      %29 = vsyncadd [#allocation6], %s28
      %s31 = sshll.u32 %s2, 4
      %s32 = int_to_ptr.vmem [resolvable:$true] %s31
      %34 = dma.vmem_to_smem %s32, 16, [#allocation5], [#allocation6]
    $region13: #{gasto_predictor.1} parent=1 // pred_fallthru
      _
    // Predicated region
    $region14: #{gasto_predictor.1} parent=1 // pred_check
      _
    $region15: #{gasto_predictor.1} parent=1 // pred_check_branch
      %36 = sbr.rel (0) target = $region17
    $region16: #{gasto_predictor.1} parent=1 // pred_region
      %s38 = ssub.s32 16, 16
      %39 = vsyncadd [#allocation6], %s38
      %s41 = sshll.u32 %s3, 4
      %s42 = int_to_ptr.vmem [resolvable:$true] %s41
      %44 = dma.vmem_to_smem %s42, 16, [#allocation7], [#allocation6]
    $region17: #{gasto_predictor.1} parent=1 // pred_fallthru
      _
    // Predicated region
    $region18: #{gasto_predictor.1} parent=1 // pred_check
      _
    $region19: #{gasto_predictor.1} parent=1 // pred_check_branch
      %46 = sbr.rel (0) target = $region21
    $region20: #{gasto_predictor.1} parent=1 // pred_region
      _
    $region21: #{gasto_predictor.1} parent=1 // pred_fallthru
      _
    // Predicated region
    $region22: #{gasto_predictor.1} parent=1 // pred_check
      _
    $region23: #{gasto_predictor.1} parent=1 // pred_check_branch
      %48 = sbr.rel (0) target = $region25
    $region24: #{gasto_predictor.1} parent=1 // pred_region
      %49 = dma.done [#allocation4], 128
    $region25: #{gasto_predictor.1} parent=1 // pred_fallthru
      _
    // Predicated region
    $region26: #{gasto_predictor.1} parent=1 // pred_check
      _
    $region27: #{gasto_predictor.1} parent=1 // pred_check_branch
      %51 = sbr.rel (0) target = $region29
    $region28: #{gasto_predictor.1} parent=1 // pred_region
      %52 = dma.done [#allocation6], 16
    $region29: #{gasto_predictor.1} parent=1 // pred_fallthru
      _
    // Predicated region
    $region30: #{gasto_predictor.1} parent=1 // pred_check
      _
    $region31: #{gasto_predictor.1} parent=1 // pred_check_branch
      %54 = sbr.rel (0) target = $region33
    $region32: #{gasto_predictor.1} parent=1 // pred_region
      %55 = dma.done [#allocation6], 16
    $region33: #{gasto_predictor.1} parent=1 // pred_fallthru
      _
    %56 = sfence
    %v57 = vld [vmem:[%s0] sm:$0xff]
    %v58 = vld [vmem:[%s0 + $0x8] sm:$0xff]
    %v59 = vld [vmem:[%s0 + $0x10] sm:$0xff]
    %v60 = vld [vmem:[%s0 + $0x18] sm:$0xff]
    %v61 = vld [vmem:[%s0 + $0x20] sm:$0xff]
    %s62 = sld [smem:[#allocation3]]
    %v63 = vstv %s62
    %v64 = vmul.f32 %v57, %v63
    %s65 = sld [smem:[#allocation3 + $0x80]]
    %v66 = vstv %s65
    %v67 = vmul.f32 %v58, %v66
    %v68 = vadd.f32 %v64, %v67
    %s69 = sld [smem:[#allocation3 + $0x100]]
    %v70 = vstv %s69
    %v71 = vmul.f32 %v59, %v70
    %v72 = vadd.f32 %v68, %v71
    %s73 = sld [smem:[#allocation3 + $0x180]]
    %v74 = vstv %s73
    %v75 = vmul.f32 %v60, %v74
    %v76 = vadd.f32 %v72, %v75
    %s77 = sld [smem:[#allocation3 + $0x200]]
    %v78 = vstv %s77
    %v79 = vmul.f32 %v61, %v78
    %v80 = vadd.f32 %v76, %v79
    %s81 = sld [smem:[#allocation5]]
    %v82 = vstv %s81
    %v83 = vadd.f32 %v80, %v82
    %v84 = vmax.f32 %v83, 0.0
    %s85 = sld [smem:[#allocation7]]
    %v86 = vstv %s85
    %v87 = vmul.f32 %v84, %v86
    %s88 = sld [smem:[#allocation2]]
    %v89 = vstv %s88
    %v90 = vadd.f32 %v87, %v89
    %s91 = sld [smem:[#allocation3 + $0x1]]
    %v92 = vstv %s91
    %v93 = vmul.f32 %v57, %v92
    %s94 = sld [smem:[#allocation3 + $0x81]]
    %v95 = vstv %s94
    %v96 = vmul.f32 %v58, %v95
    %v97 = vadd.f32 %v93, %v96
    %s98 = sld [smem:[#allocation3 + $0x101]]
    %v99 = vstv %s98
    %v100 = vmul.f32 %v59, %v99
    %v101 = vadd.f32 %v97, %v100
    %s102 = sld [smem:[#allocation3 + $0x181]]
    %v103 = vstv %s102
    %v104 = vmul.f32 %v60, %v103
    %v105 = vadd.f32 %v101, %v104
    %s106 = sld [smem:[#allocation3 + $0x201]]
    %v107 = vstv %s106
    %v108 = vmul.f32 %v61, %v107
    %v109 = vadd.f32 %v105, %v108
    %s110 = sld [smem:[#allocation5 + $0x1]]
    %v111 = vstv %s110
    %v112 = vadd.f32 %v109, %v111
    %v113 = vmax.f32 %v112, 0.0
    %s114 = sld [smem:[#allocation7 + $0x1]]
    %v115 = vstv %s114
    %v116 = vmul.f32 %v113, %v115
    %v117 = vadd.f32 %v90, %v116
    %s118 = sld [smem:[#allocation3 + $0x2]]
    %v119 = vstv %s118
    %v120 = vmul.f32 %v57, %v119
    %s121 = sld [smem:[#allocation3 + $0x82]]
    %v122 = vstv %s121
    %v123 = vmul.f32 %v58, %v122
    %v124 = vadd.f32 %v120, %v123
    %s125 = sld [smem:[#allocation3 + $0x102]]
    %v126 = vstv %s125
    %v127 = vmul.f32 %v59, %v126
    %v128 = vadd.f32 %v124, %v127
    %s129 = sld [smem:[#allocation3 + $0x182]]
    %v130 = vstv %s129
    %v131 = vmul.f32 %v60, %v130
    %v132 = vadd.f32 %v128, %v131
    %s133 = sld [smem:[#allocation3 + $0x202]]
    %v134 = vstv %s133
    %v135 = vmul.f32 %v61, %v134
    %v136 = vadd.f32 %v132, %v135
    %s137 = sld [smem:[#allocation5 + $0x2]]
    %v138 = vstv %s137
    %v139 = vadd.f32 %v136, %v138
    %v140 = vmax.f32 %v139, 0.0
    %s141 = sld [smem:[#allocation7 + $0x2]]
    %v142 = vstv %s141
    %v143 = vmul.f32 %v140, %v142
    %v144 = vadd.f32 %v117, %v143
    %s145 = sld [smem:[#allocation3 + $0x3]]
    %v146 = vstv %s145
    %v147 = vmul.f32 %v57, %v146
    %s148 = sld [smem:[#allocation3 + $0x83]]
    %v149 = vstv %s148
    %v150 = vmul.f32 %v58, %v149
    %v151 = vadd.f32 %v147, %v150
    %s152 = sld [smem:[#allocation3 + $0x103]]
    %v153 = vstv %s152
    %v154 = vmul.f32 %v59, %v153
    %v155 = vadd.f32 %v151, %v154
    %s156 = sld [smem:[#allocation3 + $0x183]]
    %v157 = vstv %s156
    %v158 = vmul.f32 %v60, %v157
    %v159 = vadd.f32 %v155, %v158
    %s160 = sld [smem:[#allocation3 + $0x203]]
    %v161 = vstv %s160
    %v162 = vmul.f32 %v61, %v161
    %v163 = vadd.f32 %v159, %v162
    %s164 = sld [smem:[#allocation5 + $0x3]]
    %v165 = vstv %s164
    %v166 = vadd.f32 %v163, %v165
    %v167 = vmax.f32 %v166, 0.0
    %s168 = sld [smem:[#allocation7 + $0x3]]
    %v169 = vstv %s168
    %v170 = vmul.f32 %v167, %v169
    %v171 = vadd.f32 %v144, %v170
    %s172 = sld [smem:[#allocation3 + $0x4]]
    %v173 = vstv %s172
    %v174 = vmul.f32 %v57, %v173
    %s175 = sld [smem:[#allocation3 + $0x84]]
    %v176 = vstv %s175
    %v177 = vmul.f32 %v58, %v176
    %v178 = vadd.f32 %v174, %v177
    %s179 = sld [smem:[#allocation3 + $0x104]]
    %v180 = vstv %s179
    %v181 = vmul.f32 %v59, %v180
    %v182 = vadd.f32 %v178, %v181
    %s183 = sld [smem:[#allocation3 + $0x184]]
    %v184 = vstv %s183
    %v185 = vmul.f32 %v60, %v184
    %v186 = vadd.f32 %v182, %v185
    %s187 = sld [smem:[#allocation3 + $0x204]]
    %v188 = vstv %s187
    %v189 = vmul.f32 %v61, %v188
    %v190 = vadd.f32 %v186, %v189
    %s191 = sld [smem:[#allocation5 + $0x4]]
    %v192 = vstv %s191
    %v193 = vadd.f32 %v190, %v192
    %v194 = vmax.f32 %v193, 0.0
    %s195 = sld [smem:[#allocation7 + $0x4]]
    %v196 = vstv %s195
    %v197 = vmul.f32 %v194, %v196
    %v198 = vadd.f32 %v171, %v197
    %s199 = sld [smem:[#allocation3 + $0x5]]
    %v200 = vstv %s199
    %v201 = vmul.f32 %v57, %v200
    %s202 = sld [smem:[#allocation3 + $0x85]]
    %v203 = vstv %s202
    %v204 = vmul.f32 %v58, %v203
    %v205 = vadd.f32 %v201, %v204
    %s206 = sld [smem:[#allocation3 + $0x105]]
    %v207 = vstv %s206
    %v208 = vmul.f32 %v59, %v207
    %v209 = vadd.f32 %v205, %v208
    %s210 = sld [smem:[#allocation3 + $0x185]]
    %v211 = vstv %s210
    %v212 = vmul.f32 %v60, %v211
    %v213 = vadd.f32 %v209, %v212
    %s214 = sld [smem:[#allocation3 + $0x205]]
    %v215 = vstv %s214
    %v216 = vmul.f32 %v61, %v215
    %v217 = vadd.f32 %v213, %v216
    %s218 = sld [smem:[#allocation5 + $0x5]]
    %v219 = vstv %s218
    %v220 = vadd.f32 %v217, %v219
    %v221 = vmax.f32 %v220, 0.0
    %s222 = sld [smem:[#allocation7 + $0x5]]
    %v223 = vstv %s222
    %v224 = vmul.f32 %v221, %v223
    %v225 = vadd.f32 %v198, %v224
    %s226 = sld [smem:[#allocation3 + $0x6]]
    %v227 = vstv %s226
    %v228 = vmul.f32 %v57, %v227
    %s229 = sld [smem:[#allocation3 + $0x86]]
    %v230 = vstv %s229
    %v231 = vmul.f32 %v58, %v230
    %v232 = vadd.f32 %v228, %v231
    %s233 = sld [smem:[#allocation3 + $0x106]]
    %v234 = vstv %s233
    %v235 = vmul.f32 %v59, %v234
    %v236 = vadd.f32 %v232, %v235
    %s237 = sld [smem:[#allocation3 + $0x186]]
    %v238 = vstv %s237
    %v239 = vmul.f32 %v60, %v238
    %v240 = vadd.f32 %v236, %v239
    %s241 = sld [smem:[#allocation3 + $0x206]]
    %v242 = vstv %s241
    %v243 = vmul.f32 %v61, %v242
    %v244 = vadd.f32 %v240, %v243
    %s245 = sld [smem:[#allocation5 + $0x6]]
    %v246 = vstv %s245
    %v247 = vadd.f32 %v244, %v246
    %v248 = vmax.f32 %v247, 0.0
    %s249 = sld [smem:[#allocation7 + $0x6]]
    %v250 = vstv %s249
    %v251 = vmul.f32 %v248, %v250
    %v252 = vadd.f32 %v225, %v251
    %s253 = sld [smem:[#allocation3 + $0x7]]
    %v254 = vstv %s253
    %v255 = vmul.f32 %v57, %v254
    %s256 = sld [smem:[#allocation3 + $0x87]]
    %v257 = vstv %s256
    %v258 = vmul.f32 %v58, %v257
    %v259 = vadd.f32 %v255, %v258
    %s260 = sld [smem:[#allocation3 + $0x107]]
    %v261 = vstv %s260
    %v262 = vmul.f32 %v59, %v261
    %v263 = vadd.f32 %v259, %v262
    %s264 = sld [smem:[#allocation3 + $0x187]]
    %v265 = vstv %s264
    %v266 = vmul.f32 %v60, %v265
    %v267 = vadd.f32 %v263, %v266
    %s268 = sld [smem:[#allocation3 + $0x207]]
    %v269 = vstv %s268
    %v270 = vmul.f32 %v61, %v269
    %v271 = vadd.f32 %v267, %v270
    %s272 = sld [smem:[#allocation5 + $0x7]]
    %v273 = vstv %s272
    %v274 = vadd.f32 %v271, %v273
    %v275 = vmax.f32 %v274, 0.0
    %s276 = sld [smem:[#allocation7 + $0x7]]
    %v277 = vstv %s276
    %v278 = vmul.f32 %v275, %v277
    %v279 = vadd.f32 %v252, %v278
    %s280 = sld [smem:[#allocation3 + $0x8]]
    %v281 = vstv %s280
    %v282 = vmul.f32 %v57, %v281
    %s283 = sld [smem:[#allocation3 + $0x88]]
    %v284 = vstv %s283
    %v285 = vmul.f32 %v58, %v284
    %v286 = vadd.f32 %v282, %v285
    %s287 = sld [smem:[#allocation3 + $0x108]]
    %v288 = vstv %s287
    %v289 = vmul.f32 %v59, %v288
    %v290 = vadd.f32 %v286, %v289
    %s291 = sld [smem:[#allocation3 + $0x188]]
    %v292 = vstv %s291
    %v293 = vmul.f32 %v60, %v292
    %v294 = vadd.f32 %v290, %v293
    %s295 = sld [smem:[#allocation3 + $0x208]]
    %v296 = vstv %s295
    %v297 = vmul.f32 %v61, %v296
    %v298 = vadd.f32 %v294, %v297
    %s299 = sld [smem:[#allocation5 + $0x8]]
    %v300 = vstv %s299
    %v301 = vadd.f32 %v298, %v300
    %v302 = vmax.f32 %v301, 0.0
    %s303 = sld [smem:[#allocation7 + $0x8]]
    %v304 = vstv %s303
    %v305 = vmul.f32 %v302, %v304
    %v306 = vadd.f32 %v279, %v305
    %s307 = sld [smem:[#allocation3 + $0x9]]
    %v308 = vstv %s307
    %v309 = vmul.f32 %v57, %v308
    %s310 = sld [smem:[#allocation3 + $0x89]]
    %v311 = vstv %s310
    %v312 = vmul.f32 %v58, %v311
    %v313 = vadd.f32 %v309, %v312
    %s314 = sld [smem:[#allocation3 + $0x109]]
    %v315 = vstv %s314
    %v316 = vmul.f32 %v59, %v315
    %v317 = vadd.f32 %v313, %v316
    %s318 = sld [smem:[#allocation3 + $0x189]]
    %v319 = vstv %s318
    %v320 = vmul.f32 %v60, %v319
    %v321 = vadd.f32 %v317, %v320
    %s322 = sld [smem:[#allocation3 + $0x209]]
    %v323 = vstv %s322
    %v324 = vmul.f32 %v61, %v323
    %v325 = vadd.f32 %v321, %v324
    %s326 = sld [smem:[#allocation5 + $0x9]]
    %v327 = vstv %s326
    %v328 = vadd.f32 %v325, %v327
    %v329 = vmax.f32 %v328, 0.0
    %s330 = sld [smem:[#allocation7 + $0x9]]
    %v331 = vstv %s330
    %v332 = vmul.f32 %v329, %v331
    %v333 = vadd.f32 %v306, %v332
    %334 = vst [vmem:[%s5] sm:$0xff] %v333
    // Predicated region
    $region34: #{gasto_predictor.1} parent=1 // pred_check
      _
    $region35: #{gasto_predictor.1} parent=1 // pred_check_branch
      %336 = sbr.rel (0) target = $region37
    $region36: #{gasto_predictor.1} parent=1 // pred_region
      _
    $region37: #{gasto_predictor.1} parent=1 // pred_fallthru
      _
    // Predicated region
    $region38: #{gasto_predictor.1} parent=1 // pred_check
      _
    $region39: #{gasto_predictor.1} parent=1 // pred_check_branch
      %338 = sbr.rel (0) target = $region41
    $region40: #{gasto_predictor.1} parent=1 // pred_region
      _
    $region41: #{gasto_predictor.1} parent=1 // pred_fallthru
      _
    %339 = vsyncpa [#allocation4], 1
    %340 = vsyncpa [#allocation6], 1

</llo_original>
